<compile_context>
chip_gen: v7x
topology: tpu7x:2x2x1
jax: 0.10.0
libtpu: 0.0.40
codegen_flags: <defaults>
</compile_context>

<pallas_src>
import jax
import jax.numpy as jnp
from jax.experimental import pallas as pl
from jax.experimental.pallas import tpu as pltpu


def _round_up(v: int, m: int) -> int:
    return ((v + m - 1) // m) * m


def _relation_mlp_kernel(x_ref, w1_ref, b1_ref, w2_ref, b2_ref, o_ref):
    # nn.ReLU() before Linear1. Operands are bf16; comparison with 0 is exact,
    # zero-padded rows/cols stay zero.
    x = jnp.maximum(x_ref[...], jnp.zeros((), x_ref.dtype))
    # Linear1: bf16 MXU matmul with f32 accumulation, bias + ReLU in f32.
    h = jnp.dot(x, w1_ref[...], preferred_element_type=jnp.float32) + b1_ref[...]
    h = jnp.maximum(h, 0.0)
    # Linear2: bf16 MXU matmul with f32 accumulation, bias in f32.
    out = jnp.dot(h.astype(w2_ref.dtype), w2_ref[...],
                  preferred_element_type=jnp.float32) + b2_ref[...]
    o_ref[...] = out.astype(o_ref.dtype)


def relation_module_forward(x, w1, b1, w2, b2, *, tile_n=256):
    """Forward pass of RelationModule.

    x : (N, num_segments, hidden_dim) or already-flattened (N, D_in), f32
    w1: (D_in, 512)  b1: (512,)   (weights stored transposed: (in, out))
    w2: (512, num_classes)  b2: (num_classes,)
    Returns (N, num_classes) classification scores in x.dtype.
    """
    n = x.shape[0]
    x_flat = x.reshape(n, -1)                      # torch's x.view(x.size(0), -1)
    d_in = x_flat.shape[1]
    bottleneck = w1.shape[1]
    num_classes = w2.shape[1]
    out_dtype = x.dtype

    # ---- padded, TPU-friendly dimensions -------------------------------
    d_in_p = _round_up(d_in, 128)                  # lane-clean K for matmul 1
    bneck_p = _round_up(bottleneck, 128)           # 512 -> 512
    nc_p = _round_up(num_classes, 128)             # lane-dense output width
    n_sub = _round_up(max(n, 1), 8)                # sublane-clean batch
    tile = min(_round_up(tile_n, 8), n_sub)        # rows per grid step
    n_p = _round_up(n_sub, tile)                   # batch divisible by tile
    grid_n = n_p // tile

    # ---- zero-pad + cast operands (glue, outside the kernel) -----------
    bf16 = jnp.bfloat16
    x_p = jnp.pad(x_flat, ((0, n_p - n), (0, d_in_p - d_in))).astype(bf16)
    w1_p = jnp.pad(w1, ((0, d_in_p - d_in), (0, bneck_p - bottleneck))).astype(bf16)
    b1_p = jnp.pad(b1, (0, bneck_p - bottleneck)).reshape(1, bneck_p).astype(jnp.float32)
    w2_p = jnp.pad(w2, ((0, bneck_p - bottleneck), (0, nc_p - num_classes))).astype(bf16)
    b2_p = jnp.pad(b2, (0, nc_p - num_classes)).reshape(1, nc_p).astype(jnp.float32)

    # ---- scheduling hint ------------------------------------------------
    flops = 2 * n_p * d_in_p * bneck_p + 2 * n_p * bneck_p * nc_p
    bytes_accessed = (x_p.size * 2 + w1_p.size * 2 + w2_p.size * 2 +
                      b1_p.size * 4 + b2_p.size * 4 + n_p * nc_p * 4)
    cost = pl.CostEstimate(flops=flops, transcendentals=0,
                           bytes_accessed=bytes_accessed)

    out_padded = pl.pallas_call(
        _relation_mlp_kernel,
        out_shape=jax.ShapeDtypeStruct((n_p, nc_p), out_dtype),
        grid_spec=pltpu.PrefetchScalarGridSpec(
            num_scalar_prefetch=0,
            grid=(grid_n,),
            in_specs=[
                pl.BlockSpec((tile, d_in_p), lambda i: (i, 0)),     # streams
                pl.BlockSpec((d_in_p, bneck_p), lambda i: (0, 0)),  # resident
                pl.BlockSpec((1, bneck_p), lambda i: (0, 0)),       # resident
                pl.BlockSpec((bneck_p, nc_p), lambda i: (0, 0)),    # resident
                pl.BlockSpec((1, nc_p), lambda i: (0, 0)),          # resident
            ],
            out_specs=pl.BlockSpec((tile, nc_p), lambda i: (i, 0)),
        ),
        compiler_params=pltpu.CompilerParams(
            dimension_semantics=("parallel",)),
        cost_estimate=cost,
    )(x_p, w1_p, b1_p, w2_p, b2_p)

    # TODO(synk): for very large d_in (e.g. num_segments*2048 on v7x), add a
    # K-axis grid over d_in with a VMEM f32 accumulator to bound W1 residency.
    return out_padded[:n, :num_classes]


def init_relation_module_params(key, hidden_dim, num_segments, num_classes,
                                bottleneck_dim=512, dtype=jnp.float32):
    """Kaiming-uniform-style init (PyTorch nn.Linear default), weights stored
    transposed as (in_features, out_features)."""
    d_in = num_segments * hidden_dim
    k1, k2, k3, k4 = jax.random.split(key, 4)
    bound1 = 1.0 / jnp.sqrt(d_in)
    bound2 = 1.0 / jnp.sqrt(bottleneck_dim)
    w1 = jax.random.uniform(k1, (d_in, bottleneck_dim), dtype, -bound1, bound1)
    b1 = jax.random.uniform(k2, (bottleneck_dim,), dtype, -bound1, bound1)
    w2 = jax.random.uniform(k3, (bottleneck_dim, num_classes), dtype, -bound2, bound2)
    b2 = jax.random.uniform(k4, (num_classes,), dtype, -bound2, bound2)
    return w1, b1, w2, b2


if __name__ == "__main__":
    # Small shapes consistent with the module.
    batch = 2
    hidden_dim = 32
    num_segments = 8
    num_classes = 10

    key = jax.random.PRNGKey(0)
    kx, kp = jax.random.split(key)

    x = jax.random.normal(kx, (batch, num_segments, hidden_dim), jnp.float32)
    w1, b1, w2, b2 = init_relation_module_params(
        kp, hidden_dim, num_segments, num_classes)

    out = relation_module_forward(x, w1, b1, w2, b2)
    out = jax.block_until_ready(out)

    # Pure-JAX reference following the same bf16-operand / f32-accumulate path.
    x_flat = x.reshape(batch, -1)
    xb = jnp.maximum(x_flat.astype(jnp.bfloat16), 0)
    ref = jnp.dot(xb, w1.astype(jnp.bfloat16),
                  preferred_element_type=jnp.float32) + b1
    ref = jnp.maximum(ref, 0.0)
    ref = jnp.dot(ref.astype(jnp.bfloat16), w2.astype(jnp.bfloat16),
                  preferred_element_type=jnp.float32) + b2

    assert out.shape == (batch, num_classes), out.shape
    assert jnp.allclose(out, ref, atol=1e-2, rtol=1e-2), "mismatch vs reference"

    # Sanity vs full-f32 math (loose tolerance due to bf16 MXU operands).
    ref_f32 = jnp.maximum(x_flat, 0.0) @ w1 + b1
    ref_f32 = jnp.maximum(ref_f32, 0.0) @ w2 + b2
    assert jnp.allclose(out, ref_f32, atol=5e-2, rtol=5e-2), "mismatch vs f32 reference"

    print("KERNEL_OK")
</pallas_src>

<mosaic_0001>
module attributes {stable_mosaic.version = 11 : i64} {
  func.func @_relation_mlp_kernel(%arg0: i32, %arg1: memref<8x256xbf16, #tpu.memory_space<vmem>>, %arg2: memref<256x512xbf16, #tpu.memory_space<vmem>>, %arg3: memref<1x512xf32, #tpu.memory_space<vmem>>, %arg4: memref<512x128xbf16, #tpu.memory_space<vmem>>, %arg5: memref<1x128xf32, #tpu.memory_space<vmem>>, %arg6: memref<8x128xf32, #tpu.memory_space<vmem>>) attributes {dimension_semantics = [#tpu.dimension_semantics<parallel>], iteration_bounds = array<i64: 1>, scalar_prefetch = 0 : i64, scratch_operands = 0 : i64, tpu.core_type = #tpu.core_type<tc>, window_params = [{transform_indices = @transform_0, window_bounds = array<i64: 8, 256>}, {pipeline_mode = #tpu.pipeline_mode<synchronous>, transform_indices = @transform_1, window_bounds = array<i64: 256, 512>}, {pipeline_mode = #tpu.pipeline_mode<synchronous>, transform_indices = @transform_2, window_bounds = array<i64: 1, 512>}, {pipeline_mode = #tpu.pipeline_mode<synchronous>, transform_indices = @transform_3, window_bounds = array<i64: 512, 128>}, {pipeline_mode = #tpu.pipeline_mode<synchronous>, transform_indices = @transform_4, window_bounds = array<i64: 1, 128>}, {transform_indices = @transform_5, window_bounds = array<i64: 8, 128>}]} {
    %c0 = arith.constant 0 : index
    %c0_0 = arith.constant 0 : index
    %0 = vector.load %arg1[%c0, %c0_0] : memref<8x256xbf16, #tpu.memory_space<vmem>>, vector<8x256xbf16>
    %cst = arith.constant 0.000000e+00 : bf16
    %1 = vector.broadcast %cst : bf16 to vector<8x256xbf16>
    %2 = arith.maximumf %0, %1 : vector<8x256xbf16>
    %c0_1 = arith.constant 0 : index
    %c0_2 = arith.constant 0 : index
    %3 = vector.load %arg2[%c0_1, %c0_2] : memref<256x512xbf16, #tpu.memory_space<vmem>>, vector<256x512xbf16>
    %cst_3 = arith.constant dense<0.000000e+00> : vector<8x512xf32>
    %4 = tpu.matmul %2, %3, %cst_3 {dimension_numbers = #tpu.dot_dimension_numbers<[1], [0], [0], [1], [0, 0, 1, 1], [], []>} : vector<8x256xbf16>, vector<256x512xbf16>, vector<8x512xf32> -> vector<8x512xf32>
    %c0_4 = arith.constant 0 : index
    %c0_5 = arith.constant 0 : index
    %5 = vector.load %arg3[%c0_4, %c0_5] : memref<1x512xf32, #tpu.memory_space<vmem>>, vector<1x512xf32>
    %6 = vector.broadcast %5 : vector<1x512xf32> to vector<8x512xf32>
    %7 = arith.addf %4, %6 : vector<8x512xf32>
    %cst_6 = arith.constant 0.000000e+00 : f32
    %8 = vector.broadcast %cst_6 : f32 to vector<8x512xf32>
    %9 = arith.maximumf %7, %8 : vector<8x512xf32>
    %10 = arith.truncf %9 : vector<8x512xf32> to vector<8x512xbf16>
    %c0_7 = arith.constant 0 : index
    %c0_8 = arith.constant 0 : index
    %11 = vector.load %arg4[%c0_7, %c0_8] : memref<512x128xbf16, #tpu.memory_space<vmem>>, vector<512x128xbf16>
    %cst_9 = arith.constant dense<0.000000e+00> : vector<8x128xf32>
    %12 = tpu.matmul %10, %11, %cst_9 {dimension_numbers = #tpu.dot_dimension_numbers<[1], [0], [0], [1], [0, 0, 1, 1], [], []>} : vector<8x512xbf16>, vector<512x128xbf16>, vector<8x128xf32> -> vector<8x128xf32>
    %c0_10 = arith.constant 0 : index
    %c0_11 = arith.constant 0 : index
    %13 = vector.load %arg5[%c0_10, %c0_11] : memref<1x128xf32, #tpu.memory_space<vmem>>, vector<1x128xf32>
    %14 = vector.broadcast %13 : vector<1x128xf32> to vector<8x128xf32>
    %15 = arith.addf %12, %14 : vector<8x128xf32>
    %c0_12 = arith.constant 0 : index
    %c0_13 = arith.constant 0 : index
    %16 = vector.load %arg6[%c0_12, %c0_13] : memref<8x128xf32, #tpu.memory_space<vmem>>, vector<8x128xf32>
    tpu.vector_store %arg6[%c0_12, %c0_13], %15 {strides = array<i32>} : memref<8x128xf32, #tpu.memory_space<vmem>>, vector<8x128xf32>,
    return
  }
  func.func @transform_0(%arg0: i32) -> (i32, i32) {
    %c0_i32 = arith.constant 0 : i32
    %c0_i32_0 = arith.constant 0 : i32
    return %arg0, %c0_i32 : i32, i32
  }
  func.func @transform_1(%arg0: i32) -> (i32, i32) {
    %c0_i32 = arith.constant 0 : i32
    %c0_i32_0 = arith.constant 0 : i32
    %c0_i32_1 = arith.constant 0 : i32
    return %c0_i32, %c0_i32_0 : i32, i32
  }
  func.func @transform_2(%arg0: i32) -> (i32, i32) {
    %c0_i32 = arith.constant 0 : i32
    %c0_i32_0 = arith.constant 0 : i32
    %c0_i32_1 = arith.constant 0 : i32
    return %c0_i32, %c0_i32_0 : i32, i32
  }
  func.func @transform_3(%arg0: i32) -> (i32, i32) {
    %c0_i32 = arith.constant 0 : i32
    %c0_i32_0 = arith.constant 0 : i32
    %c0_i32_1 = arith.constant 0 : i32
    return %c0_i32, %c0_i32_0 : i32, i32
  }
  func.func @transform_4(%arg0: i32) -> (i32, i32) {
    %c0_i32 = arith.constant 0 : i32
    %c0_i32_0 = arith.constant 0 : i32
    %c0_i32_1 = arith.constant 0 : i32
    return %c0_i32, %c0_i32_0 : i32, i32
  }
  func.func @transform_5(%arg0: i32) -> (i32, i32) {
    %c0_i32 = arith.constant 0 : i32
    %c0_i32_0 = arith.constant 0 : i32
    return %arg0, %c0_i32 : i32, i32
  }
}

</mosaic_0001>

<llo_original>
// kernel: tpu_custom_call.1
$region0: #{tpu_custom_call.1}
  #allocation0 [shape = 'u32[]', space=smem, size = 0x4, offset = 0x4, fixed_abs, tag = 'smem constant byte address 0x4 - core index']
  #allocation1 [shape = 'u32[144,128]{1,0:T(1,128)}', space=vmem, size = 0x12000, scoped, tag = 'internal scratch']
  %s0 = inlined_call_operand.hbm [shape: bf16[8,256], index: 0, kind: input, shape index: {}]
  %s1 = inlined_call_operand.hbm [shape: bf16[256,512], index: 1, kind: input, shape index: {}]
  %s2 = inlined_call_operand.vmem [shape: f32[1,512], index: 2, kind: input, shape index: {}]
  %s3 = inlined_call_operand.hbm [shape: bf16[512,128], index: 3, kind: input, shape index: {}]
  %s4 = inlined_call_operand.vmem [shape: f32[1,128], index: 4, kind: input, shape index: {}]
  %s5 = inlined_call_operand.hbm [shape: f32[8,128], index: 5, kind: output, shape index: {}]
  %s6 = sld [smem:[#allocation0]]
  $region42: #{tpu_custom_call.1} parent=0
    _
  %s8 = ssub.s32 1, %s6
  %s9 = scalar_select 0, %s8, %s6
  $region1: #{tpu_custom_call.1} parent=0
    #allocation2 [shape = 'u8[4096]{0}', space=vmem, size = 0x1000, scoped, tag = 'input window, operand 0, single buffered']
    #allocation3 [shape = 's32[1]{0}', space=sflag, size = 0x4, scoped, tag = 'scoped memory for tpu_custom_call.1']
    #allocation4 [shape = 's32[1]{0}', space=sflag, size = 0x4, scoped, tag = 'scoped memory for tpu_custom_call.1']
    #allocation5 [shape = 'u8[262144]{0}', space=vmem, size = 0x40000, scoped, tag = 'input window, operand 1, single buffered']
    #allocation6 [shape = 's32[1]{0}', space=sflag, size = 0x4, scoped, tag = 'scoped memory for tpu_custom_call.1']
    #allocation7 [shape = 'u8[131072]{0}', space=vmem, size = 0x20000, scoped, tag = 'input window, operand 3, single buffered']
    #allocation8 [shape = 'u8[4096]{0}', space=vmem, size = 0x1000, scoped, tag = 'output window, operand 0, single buffered']
    %10 = vsyncpa [#allocation3], 0
    %11 = vsyncpa [#allocation6], 0
    %12 = vsyncpa [#allocation4], 0
    // Predicated region
    $region2: #{tpu_custom_call.1} parent=1 // pred_check
      _
    $region3: #{tpu_custom_call.1} parent=1 // pred_check_branch
      %14 = sbr.rel (0) target = $region5
    $region4: #{tpu_custom_call.1} parent=1 // pred_region
      %s16 = ssub.s32 128, 128
      %17 = vsyncadd [#allocation3], %s16
      %s19 = sshll.u32 [#allocation2], 4
      %s20 = int_to_ptr.vmem [resolvable:$true] %s19
      %22 = dma.hbm_to_vmem [thread:$0]  %s0, 128, %s20, [#allocation3]
    $region5: #{tpu_custom_call.1} parent=1 // pred_fallthru
      _
    // Predicated region
    $region6: #{tpu_custom_call.1} parent=1 // pred_check
      _
    $region7: #{tpu_custom_call.1} parent=1 // pred_check_branch
      %24 = sbr.rel (0) target = $region9
    $region8: #{tpu_custom_call.1} parent=1 // pred_region
      %s26 = ssub.s32 8192, 8192
      %27 = vsyncadd [#allocation6], %s26
      %s28 = sshll.u32 [#allocation5], 4
      %s29 = int_to_ptr.vmem [resolvable:$true] %s28
      %34 = dma.hbm_to_vmem [thread:$0]  %s1, 8192, %s29, [#allocation6], 256, 256, 16
    $region9: #{tpu_custom_call.1} parent=1 // pred_fallthru
      _
    // Predicated region
    $region10: #{tpu_custom_call.1} parent=1 // pred_check
      _
    $region11: #{tpu_custom_call.1} parent=1 // pred_check_branch
      %36 = sbr.rel (0) target = $region13
    $region12: #{tpu_custom_call.1} parent=1 // pred_region
      _
    $region13: #{tpu_custom_call.1} parent=1 // pred_fallthru
      _
    // Predicated region
    $region14: #{tpu_custom_call.1} parent=1 // pred_check
      _
    $region15: #{tpu_custom_call.1} parent=1 // pred_check_branch
      %38 = sbr.rel (0) target = $region17
    $region16: #{tpu_custom_call.1} parent=1 // pred_region
      %s40 = ssub.s32 4096, 4096
      %41 = vsyncadd [#allocation6], %s40
      %s42 = sshll.u32 [#allocation7], 4
      %s43 = int_to_ptr.vmem [resolvable:$true] %s42
      %48 = dma.hbm_to_vmem [thread:$0]  %s3, 4096, %s43, [#allocation6], 64, 64, 4
    $region17: #{tpu_custom_call.1} parent=1 // pred_fallthru
      _
    // Predicated region
    $region18: #{tpu_custom_call.1} parent=1 // pred_check
      _
    $region19: #{tpu_custom_call.1} parent=1 // pred_check_branch
      %50 = sbr.rel (0) target = $region21
    $region20: #{tpu_custom_call.1} parent=1 // pred_region
      _
    $region21: #{tpu_custom_call.1} parent=1 // pred_fallthru
      _
    // Predicated region
    $region22: #{tpu_custom_call.1} parent=1 // pred_check
      _
    $region23: #{tpu_custom_call.1} parent=1 // pred_check_branch
      %52 = sbr.rel (0) target = $region25
    $region24: #{tpu_custom_call.1} parent=1 // pred_region
      %53 = dma.done [#allocation3], 128
    $region25: #{tpu_custom_call.1} parent=1 // pred_fallthru
      _
    // Predicated region
    $region26: #{tpu_custom_call.1} parent=1 // pred_check
      _
    $region27: #{tpu_custom_call.1} parent=1 // pred_check_branch
      %55 = sbr.rel (0) target = $region29
    $region28: #{tpu_custom_call.1} parent=1 // pred_region
      %56 = dma.done [#allocation6], 8192
    $region29: #{tpu_custom_call.1} parent=1 // pred_fallthru
      _
    // Predicated region
    $region30: #{tpu_custom_call.1} parent=1 // pred_check
      _
    $region31: #{tpu_custom_call.1} parent=1 // pred_check_branch
      %58 = sbr.rel (0) target = $region33
    $region32: #{tpu_custom_call.1} parent=1 // pred_region
      %59 = dma.done [#allocation6], 4096
    $region33: #{tpu_custom_call.1} parent=1 // pred_fallthru
      _
    %v61 = vld [vmem:[#allocation2] sm:$0xff]
    %v62 = vmax.bf16 %v61, 0
    %v63 = vld [vmem:[#allocation5] sm:$0xff]
    %v64 = vld [vmem:[#allocation5 + $0x8] sm:$0xff]
    %v65 = vld [vmem:[#allocation5 + $0x10] sm:$0xff]
    %v66 = vld [vmem:[#allocation5 + $0x18] sm:$0xff]
    %v67 = vld [vmem:[#allocation5 + $0x20] sm:$0xff]
    %v68 = vld [vmem:[#allocation5 + $0x28] sm:$0xff]
    %v69 = vld [vmem:[#allocation5 + $0x30] sm:$0xff]
    %v70 = vld [vmem:[#allocation5 + $0x38] sm:$0xff]
    %v71 = vld [vmem:[#allocation5 + $0x40] sm:$0xff]
    %v72 = vld [vmem:[#allocation5 + $0x48] sm:$0xff]
    %v73 = vld [vmem:[#allocation5 + $0x50] sm:$0xff]
    %v74 = vld [vmem:[#allocation5 + $0x58] sm:$0xff]
    %v75 = vld [vmem:[#allocation5 + $0x60] sm:$0xff]
    %v76 = vld [vmem:[#allocation5 + $0x68] sm:$0xff]
    %v77 = vld [vmem:[#allocation5 + $0x70] sm:$0xff]
    %v78 = vld [vmem:[#allocation5 + $0x78] sm:$0xff]
    %v79 = vld [vmem:[#allocation5 + $0x80] sm:$0xff]
    %v80 = vld [vmem:[#allocation5 + $0x88] sm:$0xff]
    %v81 = vld [vmem:[#allocation5 + $0x90] sm:$0xff]
    %v82 = vld [vmem:[#allocation5 + $0x98] sm:$0xff]
    %v83 = vld [vmem:[#allocation5 + $0xa0] sm:$0xff]
    %v84 = vld [vmem:[#allocation5 + $0xa8] sm:$0xff]
    %v85 = vld [vmem:[#allocation5 + $0xb0] sm:$0xff]
    %v86 = vld [vmem:[#allocation5 + $0xb8] sm:$0xff]
    %v87 = vld [vmem:[#allocation5 + $0xc0] sm:$0xff]
    %v88 = vld [vmem:[#allocation5 + $0xc8] sm:$0xff]
    %v89 = vld [vmem:[#allocation5 + $0xd0] sm:$0xff]
    %v90 = vld [vmem:[#allocation5 + $0xd8] sm:$0xff]
    %v91 = vld [vmem:[#allocation5 + $0xe0] sm:$0xff]
    %v92 = vld [vmem:[#allocation5 + $0xe8] sm:$0xff]
    %v93 = vld [vmem:[#allocation5 + $0xf0] sm:$0xff]
    %v94 = vld [vmem:[#allocation5 + $0xf8] sm:$0xff]
    %v95 = vld [vmem:[#allocation5 + $0x100] sm:$0xff]
    %v96 = vld [vmem:[#allocation5 + $0x108] sm:$0xff]
    %v97 = vld [vmem:[#allocation5 + $0x110] sm:$0xff]
    %v98 = vld [vmem:[#allocation5 + $0x118] sm:$0xff]
    %v99 = vld [vmem:[#allocation5 + $0x120] sm:$0xff]
    %v100 = vld [vmem:[#allocation5 + $0x128] sm:$0xff]
    %v101 = vld [vmem:[#allocation5 + $0x130] sm:$0xff]
    %v102 = vld [vmem:[#allocation5 + $0x138] sm:$0xff]
    %v103 = vld [vmem:[#allocation5 + $0x140] sm:$0xff]
    %v104 = vld [vmem:[#allocation5 + $0x148] sm:$0xff]
    %v105 = vld [vmem:[#allocation5 + $0x150] sm:$0xff]
    %v106 = vld [vmem:[#allocation5 + $0x158] sm:$0xff]
    %v107 = vld [vmem:[#allocation5 + $0x160] sm:$0xff]
    %v108 = vld [vmem:[#allocation5 + $0x168] sm:$0xff]
    %v109 = vld [vmem:[#allocation5 + $0x170] sm:$0xff]
    %v110 = vld [vmem:[#allocation5 + $0x178] sm:$0xff]
    %v111 = vld [vmem:[#allocation5 + $0x180] sm:$0xff]
    %v112 = vld [vmem:[#allocation5 + $0x188] sm:$0xff]
    %v113 = vld [vmem:[#allocation5 + $0x190] sm:$0xff]
    %v114 = vld [vmem:[#allocation5 + $0x198] sm:$0xff]
    %v115 = vld [vmem:[#allocation5 + $0x1a0] sm:$0xff]
    %v116 = vld [vmem:[#allocation5 + $0x1a8] sm:$0xff]
    %v117 = vld [vmem:[#allocation5 + $0x1b0] sm:$0xff]
    %v118 = vld [vmem:[#allocation5 + $0x1b8] sm:$0xff]
    %v119 = vld [vmem:[#allocation5 + $0x1c0] sm:$0xff]
    %v120 = vld [vmem:[#allocation5 + $0x1c8] sm:$0xff]
    %v121 = vld [vmem:[#allocation5 + $0x1d0] sm:$0xff]
    %v122 = vld [vmem:[#allocation5 + $0x1d8] sm:$0xff]
    %v123 = vld [vmem:[#allocation5 + $0x1e0] sm:$0xff]
    %v124 = vld [vmem:[#allocation5 + $0x1e8] sm:$0xff]
    %v125 = vld [vmem:[#allocation5 + $0x1f0] sm:$0xff]
    %v126 = vld [vmem:[#allocation5 + $0x1f8] sm:$0xff]
    %v127 = vld [vmem:[%s2] sm:$0xf]
    %v129 = vlaneseq
    %v130 = vshrl.u32 %v129, 7
    %v131 = vsub.s32 0, %v130
    %v132 = vrot.slane %v127, %v131
    %v133 = vlaneseq
    %v134 = vshrl.u32 %v133, 7
    %v135 = vsub.s32 1, %v134
    %v136 = vrot.slane %v127, %v135
    %v137 = vlaneseq
    %v138 = vshrl.u32 %v137, 7
    %v139 = vsub.s32 2, %v138
    %v140 = vrot.slane %v127, %v139
    %v141 = vlaneseq
    %v142 = vshrl.u32 %v141, 7
    %v143 = vsub.s32 3, %v142
    %v144 = vrot.slane %v127, %v143
    %v150 = vunpack.c.l.b16 %v62
    %v151 = vunpack.c.h.b16 %v62
    %v152 = vpack.c.b16 %v150, %v150
    %v153 = vpack.c.b16 %v151, %v151
    %v220 = vunpack.c.l.b16 %v63
    %v221 = vunpack.c.h.b16 %v63
    %v222 = vunpack.c.l.b16 %v64
    %v223 = vunpack.c.h.b16 %v64
    %v224 = vunpack.c.l.b16 %v65
    %v225 = vunpack.c.h.b16 %v65
    %v226 = vunpack.c.l.b16 %v66
    %v227 = vunpack.c.h.b16 %v66
    %v228 = vunpack.c.l.b16 %v67
    %v229 = vunpack.c.h.b16 %v67
    %v230 = vunpack.c.l.b16 %v68
    %v231 = vunpack.c.h.b16 %v68
    %v232 = vunpack.c.l.b16 %v69
    %v233 = vunpack.c.h.b16 %v69
    %v234 = vunpack.c.l.b16 %v70
    %v235 = vunpack.c.h.b16 %v70
    %v236 = vunpack.c.l.b16 %v71
    %v237 = vunpack.c.h.b16 %v71
    %v238 = vunpack.c.l.b16 %v72
    %v239 = vunpack.c.h.b16 %v72
    %v240 = vunpack.c.l.b16 %v73
    %v241 = vunpack.c.h.b16 %v73
    %v242 = vunpack.c.l.b16 %v74
    %v243 = vunpack.c.h.b16 %v74
    %v244 = vunpack.c.l.b16 %v75
    %v245 = vunpack.c.h.b16 %v75
    %v246 = vunpack.c.l.b16 %v76
    %v247 = vunpack.c.h.b16 %v76
    %v248 = vunpack.c.l.b16 %v77
    %v249 = vunpack.c.h.b16 %v77
    %v250 = vunpack.c.l.b16 %v78
    %v251 = vunpack.c.h.b16 %v78
    %v252 = vunpack.c.l.b16 %v79
    %v253 = vunpack.c.h.b16 %v79
    %v254 = vunpack.c.l.b16 %v80
    %v255 = vunpack.c.h.b16 %v80
    %v256 = vunpack.c.l.b16 %v81
    %v257 = vunpack.c.h.b16 %v81
    %v258 = vunpack.c.l.b16 %v82
    %v259 = vunpack.c.h.b16 %v82
    %v260 = vunpack.c.l.b16 %v83
    %v261 = vunpack.c.h.b16 %v83
    %v262 = vunpack.c.l.b16 %v84
    %v263 = vunpack.c.h.b16 %v84
    %v264 = vunpack.c.l.b16 %v85
    %v265 = vunpack.c.h.b16 %v85
    %v266 = vunpack.c.l.b16 %v86
    %v267 = vunpack.c.h.b16 %v86
    %v268 = vunpack.c.l.b16 %v87
    %v269 = vunpack.c.h.b16 %v87
    %v270 = vunpack.c.l.b16 %v88
    %v271 = vunpack.c.h.b16 %v88
    %v272 = vunpack.c.l.b16 %v89
    %v273 = vunpack.c.h.b16 %v89
    %v274 = vunpack.c.l.b16 %v90
    %v275 = vunpack.c.h.b16 %v90
    %v276 = vunpack.c.l.b16 %v91
    %v277 = vunpack.c.h.b16 %v91
    %v278 = vunpack.c.l.b16 %v92
    %v279 = vunpack.c.h.b16 %v92
    %v280 = vunpack.c.l.b16 %v93
    %v281 = vunpack.c.h.b16 %v93
    %v282 = vunpack.c.l.b16 %v94
    %v283 = vunpack.c.h.b16 %v94
    %v284 = vunpack.c.l.b16 %v95
    %v285 = vunpack.c.h.b16 %v95
    %v286 = vunpack.c.l.b16 %v96
    %v287 = vunpack.c.h.b16 %v96
    %v288 = vunpack.c.l.b16 %v97
    %v289 = vunpack.c.h.b16 %v97
    %v290 = vunpack.c.l.b16 %v98
    %v291 = vunpack.c.h.b16 %v98
    %v292 = vunpack.c.l.b16 %v99
    %v293 = vunpack.c.h.b16 %v99
    %v294 = vunpack.c.l.b16 %v100
    %v295 = vunpack.c.h.b16 %v100
    %v296 = vunpack.c.l.b16 %v101
    %v297 = vunpack.c.h.b16 %v101
    %v298 = vunpack.c.l.b16 %v102
    %v299 = vunpack.c.h.b16 %v102
    %v300 = vunpack.c.l.b16 %v103
    %v301 = vunpack.c.h.b16 %v103
    %v302 = vunpack.c.l.b16 %v104
    %v303 = vunpack.c.h.b16 %v104
    %v304 = vunpack.c.l.b16 %v105
    %v305 = vunpack.c.h.b16 %v105
    %v306 = vunpack.c.l.b16 %v106
    %v307 = vunpack.c.h.b16 %v106
    %v308 = vunpack.c.l.b16 %v107
    %v309 = vunpack.c.h.b16 %v107
    %v310 = vunpack.c.l.b16 %v108
    %v311 = vunpack.c.h.b16 %v108
    %v312 = vunpack.c.l.b16 %v109
    %v313 = vunpack.c.h.b16 %v109
    %v314 = vunpack.c.l.b16 %v110
    %v315 = vunpack.c.h.b16 %v110
    %v316 = vunpack.c.l.b16 %v111
    %v317 = vunpack.c.h.b16 %v111
    %v318 = vunpack.c.l.b16 %v112
    %v319 = vunpack.c.h.b16 %v112
    %v320 = vunpack.c.l.b16 %v113
    %v321 = vunpack.c.h.b16 %v113
    %v322 = vunpack.c.l.b16 %v114
    %v323 = vunpack.c.h.b16 %v114
    %v324 = vunpack.c.l.b16 %v115
    %v325 = vunpack.c.h.b16 %v115
    %v326 = vunpack.c.l.b16 %v116
    %v327 = vunpack.c.h.b16 %v116
    %v328 = vunpack.c.l.b16 %v117
    %v329 = vunpack.c.h.b16 %v117
    %v330 = vunpack.c.l.b16 %v118
    %v331 = vunpack.c.h.b16 %v118
    %v332 = vunpack.c.l.b16 %v119
    %v333 = vunpack.c.h.b16 %v119
    %v334 = vunpack.c.l.b16 %v120
    %v335 = vunpack.c.h.b16 %v120
    %v336 = vunpack.c.l.b16 %v121
    %v337 = vunpack.c.h.b16 %v121
    %v338 = vunpack.c.l.b16 %v122
    %v339 = vunpack.c.h.b16 %v122
    %v340 = vunpack.c.l.b16 %v123
    %v341 = vunpack.c.h.b16 %v123
    %v342 = vunpack.c.l.b16 %v124
    %v343 = vunpack.c.h.b16 %v124
    %v344 = vunpack.c.l.b16 %v125
    %v345 = vunpack.c.h.b16 %v125
    %v346 = vunpack.c.l.b16 %v126
    %v347 = vunpack.c.h.b16 %v126
    %v348 = vpack.c.b16 %v224, %v220
    %v349 = vpack.c.b16 %v225, %v221
    %v350 = vpack.c.b16 %v226, %v222
    %v351 = vpack.c.b16 %v227, %v223
    %v352 = vpack.c.b16 %v232, %v228
    %v353 = vpack.c.b16 %v233, %v229
    %v354 = vpack.c.b16 %v234, %v230
    %v355 = vpack.c.b16 %v235, %v231
    %v356 = vpack.c.b16 %v240, %v236
    %v357 = vpack.c.b16 %v241, %v237
    %v358 = vpack.c.b16 %v242, %v238
    %v359 = vpack.c.b16 %v243, %v239
    %v360 = vpack.c.b16 %v248, %v244
    %v361 = vpack.c.b16 %v249, %v245
    %v362 = vpack.c.b16 %v250, %v246
    %v363 = vpack.c.b16 %v251, %v247
    %v364 = vpack.c.b16 %v256, %v252
    %v365 = vpack.c.b16 %v257, %v253
    %v366 = vpack.c.b16 %v258, %v254
    %v367 = vpack.c.b16 %v259, %v255
    %v368 = vpack.c.b16 %v264, %v260
    %v369 = vpack.c.b16 %v265, %v261
    %v370 = vpack.c.b16 %v266, %v262
    %v371 = vpack.c.b16 %v267, %v263
    %v372 = vpack.c.b16 %v272, %v268
    %v373 = vpack.c.b16 %v273, %v269
    %v374 = vpack.c.b16 %v274, %v270
    %v375 = vpack.c.b16 %v275, %v271
    %v376 = vpack.c.b16 %v280, %v276
    %v377 = vpack.c.b16 %v281, %v277
    %v378 = vpack.c.b16 %v282, %v278
    %v379 = vpack.c.b16 %v283, %v279
    %v380 = vpack.c.b16 %v288, %v284
    %v381 = vpack.c.b16 %v289, %v285
    %v382 = vpack.c.b16 %v290, %v286
    %v383 = vpack.c.b16 %v291, %v287
    %v384 = vpack.c.b16 %v296, %v292
    %v385 = vpack.c.b16 %v297, %v293
    %v386 = vpack.c.b16 %v298, %v294
    %v387 = vpack.c.b16 %v299, %v295
    %v388 = vpack.c.b16 %v304, %v300
    %v389 = vpack.c.b16 %v305, %v301
    %v390 = vpack.c.b16 %v306, %v302
    %v391 = vpack.c.b16 %v307, %v303
    %v392 = vpack.c.b16 %v312, %v308
    %v393 = vpack.c.b16 %v313, %v309
    %v394 = vpack.c.b16 %v314, %v310
    %v395 = vpack.c.b16 %v315, %v311
    %v396 = vpack.c.b16 %v320, %v316
    %v397 = vpack.c.b16 %v321, %v317
    %v398 = vpack.c.b16 %v322, %v318
    %v399 = vpack.c.b16 %v323, %v319
    %v400 = vpack.c.b16 %v328, %v324
    %v401 = vpack.c.b16 %v329, %v325
    %v402 = vpack.c.b16 %v330, %v326
    %v403 = vpack.c.b16 %v331, %v327
    %v404 = vpack.c.b16 %v336, %v332
    %v405 = vpack.c.b16 %v337, %v333
    %v406 = vpack.c.b16 %v338, %v334
    %v407 = vpack.c.b16 %v339, %v335
    %v408 = vpack.c.b16 %v344, %v340
    %v409 = vpack.c.b16 %v345, %v341
    %v410 = vpack.c.b16 %v346, %v342
    %v411 = vpack.c.b16 %v347, %v343
    %476 = vmatprep.subr.bf16.mxu0 %v349
    %477 = vmatpush1.bf16.msra.mxu0 %v348
    %478 = vmatprep.subr.bf16.mxu0 %v353
    %479 = vmatpush1.bf16.msra.mxu0 %v352
    %480 = vmatprep.subr.bf16.mxu0 %v357
    %481 = vmatpush1.bf16.msra.mxu0 %v356
    %482 = vmatprep.subr.bf16.mxu0 %v361
    %483 = vmatpush1.bf16.msra.mxu0 %v360
    %484 = vmatprep.subr.bf16.mxu0 %v365
    %485 = vmatpush1.bf16.msra.mxu0 %v364
    %486 = vmatprep.subr.bf16.mxu0 %v369
    %487 = vmatpush1.bf16.msra.mxu0 %v368
    %488 = vmatprep.subr.bf16.mxu0 %v373
    %489 = vmatpush1.bf16.msra.mxu0 %v372
    %490 = vmatprep.subr.bf16.mxu0 %v377
    %491 = vmatpush1.bf16.msra.mxu0 %v376
    %492 = vmatprep.subr.bf16.mxu0 %v381
    %493 = vmatpush1.bf16.msra.mxu0 %v380
    %494 = vmatprep.subr.bf16.mxu0 %v385
    %495 = vmatpush1.bf16.msra.mxu0 %v384
    %496 = vmatprep.subr.bf16.mxu0 %v389
    %497 = vmatpush1.bf16.msra.mxu0 %v388
    %498 = vmatprep.subr.bf16.mxu0 %v393
    %499 = vmatpush1.bf16.msra.mxu0 %v392
    %500 = vmatprep.subr.bf16.mxu0 %v397
    %501 = vmatpush1.bf16.msra.mxu0 %v396
    %502 = vmatprep.subr.bf16.mxu0 %v401
    %503 = vmatpush1.bf16.msra.mxu0 %v400
    %504 = vmatprep.subr.bf16.mxu0 %v405
    %505 = vmatpush1.bf16.msra.mxu0 %v404
    %506 = vmatprep.subr.bf16.mxu0 %v409
    %507 = vmatpush1.bf16.msra.mxu0 %v408
    %508 = vmatprep.mubr.bf16.mxu0 %v153
    %509 = vmatmul.mubr.bf16.gmra.mrb[0].mxu0 %v152
    %v510 = vpop.f32.mrb[0].mxu0
    %v511 = vadd.f32 %v132, %v510
    %v512 = vpop.f32.mrb[0].mxu0
    %v513 = vadd.f32 %v136, %v512
    %v514 = vpop.f32.mrb[0].mxu0
    %v515 = vpop.f32.mrb[0].mxu0
    %516 = vdwg.mxu0
    %517 = vmatprep.subr.bf16.mxu0 %v351
    %518 = vmatpush1.bf16.msra.mxu0 %v350
    %519 = vmatprep.subr.bf16.mxu0 %v355
    %520 = vmatpush1.bf16.msra.mxu0 %v354
    %521 = vmatprep.subr.bf16.mxu0 %v359
    %522 = vmatpush1.bf16.msra.mxu0 %v358
    %523 = vmatprep.subr.bf16.mxu0 %v363
    %524 = vmatpush1.bf16.msra.mxu0 %v362
    %525 = vmatprep.subr.bf16.mxu0 %v367
    %526 = vmatpush1.bf16.msra.mxu0 %v366
    %527 = vmatprep.subr.bf16.mxu0 %v371
    %528 = vmatpush1.bf16.msra.mxu0 %v370
    %529 = vmatprep.subr.bf16.mxu0 %v375
    %530 = vmatpush1.bf16.msra.mxu0 %v374
    %531 = vmatprep.subr.bf16.mxu0 %v379
    %532 = vmatpush1.bf16.msra.mxu0 %v378
    %533 = vmatprep.subr.bf16.mxu0 %v383
    %534 = vmatpush1.bf16.msra.mxu0 %v382
    %535 = vmatprep.subr.bf16.mxu0 %v387
    %536 = vmatpush1.bf16.msra.mxu0 %v386
    %537 = vmatprep.subr.bf16.mxu0 %v391
    %538 = vmatpush1.bf16.msra.mxu0 %v390
    %539 = vmatprep.subr.bf16.mxu0 %v395
    %540 = vmatpush1.bf16.msra.mxu0 %v394
    %541 = vmatprep.subr.bf16.mxu0 %v399
    %542 = vmatpush1.bf16.msra.mxu0 %v398
    %543 = vmatprep.subr.bf16.mxu0 %v403
    %544 = vmatpush1.bf16.msra.mxu0 %v402
    %545 = vmatprep.subr.bf16.mxu0 %v407
    %546 = vmatpush1.bf16.msra.mxu0 %v406
    %547 = vmatprep.subr.bf16.mxu0 %v411
    %548 = vmatpush1.bf16.msra.mxu0 %v410
    %549 = vmatprep.mubr.bf16.mxu0 %v153
    %550 = vmatmul.mubr.bf16.gmra.mrb[0].mxu0 %v152
    %v551 = vpop.f32.mrb[0].mxu0
    %v552 = vadd.f32 %v140, %v551
    %v553 = vpop.f32.mrb[0].mxu0
    %v554 = vadd.f32 %v144, %v553
    %v555 = vpop.f32.mrb[0].mxu0
    %v556 = vpop.f32.mrb[0].mxu0
    %557 = vdwg.mxu0
    %v558 = vmax.f32 %v511, 0.0
    %v559 = vmax.f32 %v513, 0.0
    %v560 = vmax.f32 %v552, 0.0
    %v561 = vmax.f32 %v554, 0.0
    %v562 = vpack.c.bf16 %v558, %v558
    %v563 = vpack.c.bf16 %v559, %v559
    %v564 = vpack.c.bf16 %v560, %v560
    %v565 = vpack.c.bf16 %v561, %v561
    %v566 = vld [vmem:[#allocation7] sm:$0xf]
    %v567 = vld [vmem:[#allocation7 + $0x4] sm:$0xf]
    %v568 = vld [vmem:[#allocation7 + $0x8] sm:$0xf]
    %v569 = vld [vmem:[#allocation7 + $0xc] sm:$0xf]
    %v570 = vld [vmem:[#allocation7 + $0x10] sm:$0xf]
    %v571 = vld [vmem:[#allocation7 + $0x14] sm:$0xf]
    %v572 = vld [vmem:[#allocation7 + $0x18] sm:$0xf]
    %v573 = vld [vmem:[#allocation7 + $0x1c] sm:$0xf]
    %v574 = vld [vmem:[#allocation7 + $0x20] sm:$0xf]
    %v575 = vld [vmem:[#allocation7 + $0x24] sm:$0xf]
    %v576 = vld [vmem:[#allocation7 + $0x28] sm:$0xf]
    %v577 = vld [vmem:[#allocation7 + $0x2c] sm:$0xf]
    %v578 = vld [vmem:[#allocation7 + $0x30] sm:$0xf]
    %v579 = vld [vmem:[#allocation7 + $0x34] sm:$0xf]
    %v580 = vld [vmem:[#allocation7 + $0x38] sm:$0xf]
    %v581 = vld [vmem:[#allocation7 + $0x3c] sm:$0xf]
    %v582 = vld [vmem:[#allocation7 + $0x40] sm:$0xf]
    %v583 = vld [vmem:[#allocation7 + $0x44] sm:$0xf]
    %v584 = vld [vmem:[#allocation7 + $0x48] sm:$0xf]
    %v585 = vld [vmem:[#allocation7 + $0x4c] sm:$0xf]
    %v586 = vld [vmem:[#allocation7 + $0x50] sm:$0xf]
    %v587 = vld [vmem:[#allocation7 + $0x54] sm:$0xf]
    %v588 = vld [vmem:[#allocation7 + $0x58] sm:$0xf]
    %v589 = vld [vmem:[#allocation7 + $0x5c] sm:$0xf]
    %v590 = vld [vmem:[#allocation7 + $0x60] sm:$0xf]
    %v591 = vld [vmem:[#allocation7 + $0x64] sm:$0xf]
    %v592 = vld [vmem:[#allocation7 + $0x68] sm:$0xf]
    %v593 = vld [vmem:[#allocation7 + $0x6c] sm:$0xf]
    %v594 = vld [vmem:[#allocation7 + $0x70] sm:$0xf]
    %v595 = vld [vmem:[#allocation7 + $0x74] sm:$0xf]
    %v596 = vld [vmem:[#allocation7 + $0x78] sm:$0xf]
    %v597 = vld [vmem:[#allocation7 + $0x7c] sm:$0xf]
    %v598 = vld [vmem:[#allocation7 + $0x80] sm:$0xf]
    %v599 = vld [vmem:[#allocation7 + $0x84] sm:$0xf]
    %v600 = vld [vmem:[#allocation7 + $0x88] sm:$0xf]
    %v601 = vld [vmem:[#allocation7 + $0x8c] sm:$0xf]
    %v602 = vld [vmem:[#allocation7 + $0x90] sm:$0xf]
    %v603 = vld [vmem:[#allocation7 + $0x94] sm:$0xf]
    %v604 = vld [vmem:[#allocation7 + $0x98] sm:$0xf]
    %v605 = vld [vmem:[#allocation7 + $0x9c] sm:$0xf]
    %v606 = vld [vmem:[#allocation7 + $0xa0] sm:$0xf]
    %v607 = vld [vmem:[#allocation7 + $0xa4] sm:$0xf]
    %v608 = vld [vmem:[#allocation7 + $0xa8] sm:$0xf]
    %v609 = vld [vmem:[#allocation7 + $0xac] sm:$0xf]
    %v610 = vld [vmem:[#allocation7 + $0xb0] sm:$0xf]
    %v611 = vld [vmem:[#allocation7 + $0xb4] sm:$0xf]
    %v612 = vld [vmem:[#allocation7 + $0xb8] sm:$0xf]
    %v613 = vld [vmem:[#allocation7 + $0xbc] sm:$0xf]
    %v614 = vld [vmem:[#allocation7 + $0xc0] sm:$0xf]
    %v615 = vld [vmem:[#allocation7 + $0xc4] sm:$0xf]
    %v616 = vld [vmem:[#allocation7 + $0xc8] sm:$0xf]
    %v617 = vld [vmem:[#allocation7 + $0xcc] sm:$0xf]
    %v618 = vld [vmem:[#allocation7 + $0xd0] sm:$0xf]
    %v619 = vld [vmem:[#allocation7 + $0xd4] sm:$0xf]
    %v620 = vld [vmem:[#allocation7 + $0xd8] sm:$0xf]
    %v621 = vld [vmem:[#allocation7 + $0xdc] sm:$0xf]
    %v622 = vld [vmem:[#allocation7 + $0xe0] sm:$0xf]
    %v623 = vld [vmem:[#allocation7 + $0xe4] sm:$0xf]
    %v624 = vld [vmem:[#allocation7 + $0xe8] sm:$0xf]
    %v625 = vld [vmem:[#allocation7 + $0xec] sm:$0xf]
    %v626 = vld [vmem:[#allocation7 + $0xf0] sm:$0xf]
    %v627 = vld [vmem:[#allocation7 + $0xf4] sm:$0xf]
    %v628 = vld [vmem:[#allocation7 + $0xf8] sm:$0xf]
    %v629 = vld [vmem:[#allocation7 + $0xfc] sm:$0xf]
    %v630 = vld [vmem:[%s4] sm:$0x1]
    %v632 = vlaneseq
    %v633 = vshrl.u32 %v632, 7
    %v634 = vsub.s32 0, %v633
    %v635 = vrot.slane %v630, %v634
    %v701 = vunpack.c.l.b16 %v566
    %v702 = vunpack.c.l.b16 %v567
    %v703 = vunpack.c.l.b16 %v568
    %v704 = vunpack.c.l.b16 %v569
    %v705 = vunpack.c.l.b16 %v570
    %v706 = vunpack.c.l.b16 %v571
    %v707 = vunpack.c.l.b16 %v572
    %v708 = vunpack.c.l.b16 %v573
    %v709 = vunpack.c.l.b16 %v574
    %v710 = vunpack.c.l.b16 %v575
    %v711 = vunpack.c.l.b16 %v576
    %v712 = vunpack.c.l.b16 %v577
    %v713 = vunpack.c.l.b16 %v578
    %v714 = vunpack.c.l.b16 %v579
    %v715 = vunpack.c.l.b16 %v580
    %v716 = vunpack.c.l.b16 %v581
    %v717 = vunpack.c.l.b16 %v582
    %v718 = vunpack.c.l.b16 %v583
    %v719 = vunpack.c.l.b16 %v584
    %v720 = vunpack.c.l.b16 %v585
    %v721 = vunpack.c.l.b16 %v586
    %v722 = vunpack.c.l.b16 %v587
    %v723 = vunpack.c.l.b16 %v588
    %v724 = vunpack.c.l.b16 %v589
    %v725 = vunpack.c.l.b16 %v590
    %v726 = vunpack.c.l.b16 %v591
    %v727 = vunpack.c.l.b16 %v592
    %v728 = vunpack.c.l.b16 %v593
    %v729 = vunpack.c.l.b16 %v594
    %v730 = vunpack.c.l.b16 %v595
    %v731 = vunpack.c.l.b16 %v596
    %v732 = vunpack.c.l.b16 %v597
    %v733 = vunpack.c.l.b16 %v598
    %v734 = vunpack.c.l.b16 %v599
    %v735 = vunpack.c.l.b16 %v600
    %v736 = vunpack.c.l.b16 %v601
    %v737 = vunpack.c.l.b16 %v602
    %v738 = vunpack.c.l.b16 %v603
    %v739 = vunpack.c.l.b16 %v604
    %v740 = vunpack.c.l.b16 %v605
    %v741 = vunpack.c.l.b16 %v606
    %v742 = vunpack.c.l.b16 %v607
    %v743 = vunpack.c.l.b16 %v608
    %v744 = vunpack.c.l.b16 %v609
    %v745 = vunpack.c.l.b16 %v610
    %v746 = vunpack.c.l.b16 %v611
    %v747 = vunpack.c.l.b16 %v612
    %v748 = vunpack.c.l.b16 %v613
    %v749 = vunpack.c.l.b16 %v614
    %v750 = vunpack.c.l.b16 %v615
    %v751 = vunpack.c.l.b16 %v616
    %v752 = vunpack.c.l.b16 %v617
    %v753 = vunpack.c.l.b16 %v618
    %v754 = vunpack.c.l.b16 %v619
    %v755 = vunpack.c.l.b16 %v620
    %v756 = vunpack.c.l.b16 %v621
    %v757 = vunpack.c.l.b16 %v622
    %v758 = vunpack.c.l.b16 %v623
    %v759 = vunpack.c.l.b16 %v624
    %v760 = vunpack.c.l.b16 %v625
    %v761 = vunpack.c.l.b16 %v626
    %v762 = vunpack.c.l.b16 %v627
    %v763 = vunpack.c.l.b16 %v628
    %v764 = vunpack.c.l.b16 %v629
    %v765 = vpack.c.b16 %v702, %v701
    %v766 = vpack.c.b16 %v704, %v703
    %v767 = vpack.c.b16 %v706, %v705
    %v768 = vpack.c.b16 %v708, %v707
    %v769 = vpack.c.b16 %v710, %v709
    %v770 = vpack.c.b16 %v712, %v711
    %v771 = vpack.c.b16 %v714, %v713
    %v772 = vpack.c.b16 %v716, %v715
    %v773 = vpack.c.b16 %v718, %v717
    %v774 = vpack.c.b16 %v720, %v719
    %v775 = vpack.c.b16 %v722, %v721
    %v776 = vpack.c.b16 %v724, %v723
    %v777 = vpack.c.b16 %v726, %v725
    %v778 = vpack.c.b16 %v728, %v727
    %v779 = vpack.c.b16 %v730, %v729
    %v780 = vpack.c.b16 %v732, %v731
    %v781 = vpack.c.b16 %v734, %v733
    %v782 = vpack.c.b16 %v736, %v735
    %v783 = vpack.c.b16 %v738, %v737
    %v784 = vpack.c.b16 %v740, %v739
    %v785 = vpack.c.b16 %v742, %v741
    %v786 = vpack.c.b16 %v744, %v743
    %v787 = vpack.c.b16 %v746, %v745
    %v788 = vpack.c.b16 %v748, %v747
    %v789 = vpack.c.b16 %v750, %v749
    %v790 = vpack.c.b16 %v752, %v751
    %v791 = vpack.c.b16 %v754, %v753
    %v792 = vpack.c.b16 %v756, %v755
    %v793 = vpack.c.b16 %v758, %v757
    %v794 = vpack.c.b16 %v760, %v759
    %v795 = vpack.c.b16 %v762, %v761
    %v796 = vpack.c.b16 %v764, %v763
    %829 = vmatprep.subr.bf16.mxu0 0
    %830 = vmatpush1.bf16.msra.mxu0 %v765
    %831 = vmatprep.subr.bf16.mxu0 0
    %832 = vmatpush1.bf16.msra.mxu0 %v766
    %833 = vmatprep.subr.bf16.mxu0 0
    %834 = vmatpush1.bf16.msra.mxu0 %v767
    %835 = vmatprep.subr.bf16.mxu0 0
    %836 = vmatpush1.bf16.msra.mxu0 %v768
    %837 = vmatprep.subr.bf16.mxu0 0
    %838 = vmatpush1.bf16.msra.mxu0 %v769
    %839 = vmatprep.subr.bf16.mxu0 0
    %840 = vmatpush1.bf16.msra.mxu0 %v770
    %841 = vmatprep.subr.bf16.mxu0 0
    %842 = vmatpush1.bf16.msra.mxu0 %v771
    %843 = vmatprep.subr.bf16.mxu0 0
    %844 = vmatpush1.bf16.msra.mxu0 %v772
    %845 = vmatprep.subr.bf16.mxu0 0
    %846 = vmatpush1.bf16.msra.mxu0 %v773
    %847 = vmatprep.subr.bf16.mxu0 0
    %848 = vmatpush1.bf16.msra.mxu0 %v774
    %849 = vmatprep.subr.bf16.mxu0 0
    %850 = vmatpush1.bf16.msra.mxu0 %v775
    %851 = vmatprep.subr.bf16.mxu0 0
    %852 = vmatpush1.bf16.msra.mxu0 %v776
    %853 = vmatprep.subr.bf16.mxu0 0
    %854 = vmatpush1.bf16.msra.mxu0 %v777
    %855 = vmatprep.subr.bf16.mxu0 0
    %856 = vmatpush1.bf16.msra.mxu0 %v778
    %857 = vmatprep.subr.bf16.mxu0 0
    %858 = vmatpush1.bf16.msra.mxu0 %v779
    %859 = vmatprep.subr.bf16.mxu0 0
    %860 = vmatpush1.bf16.msra.mxu0 %v780
    %861 = vmatprep.mubr.bf16.mxu0 %v563
    %862 = vmatmul.mubr.bf16.gmra.mrb[0].mxu0 %v562
    %v863 = vpop.f32.mrb[0].mxu0
    %v864 = vadd.f32 %v635, %v863
    %v865 = vpop.f32.mrb[0].mxu0
    %v866 = vpop.f32.mrb[0].mxu0
    %v867 = vpop.f32.mrb[0].mxu0
    %868 = vdwg.mxu0
    %869 = vmatprep.subr.bf16.mxu0 0
    %870 = vmatpush1.bf16.msra.mxu0 %v781
    %871 = vmatprep.subr.bf16.mxu0 0
    %872 = vmatpush1.bf16.msra.mxu0 %v782
    %873 = vmatprep.subr.bf16.mxu0 0
    %874 = vmatpush1.bf16.msra.mxu0 %v783
    %875 = vmatprep.subr.bf16.mxu0 0
    %876 = vmatpush1.bf16.msra.mxu0 %v784
    %877 = vmatprep.subr.bf16.mxu0 0
    %878 = vmatpush1.bf16.msra.mxu0 %v785
    %879 = vmatprep.subr.bf16.mxu0 0
    %880 = vmatpush1.bf16.msra.mxu0 %v786
    %881 = vmatprep.subr.bf16.mxu0 0
    %882 = vmatpush1.bf16.msra.mxu0 %v787
    %883 = vmatprep.subr.bf16.mxu0 0
    %884 = vmatpush1.bf16.msra.mxu0 %v788
    %885 = vmatprep.subr.bf16.mxu0 0
    %886 = vmatpush1.bf16.msra.mxu0 %v789
    %887 = vmatprep.subr.bf16.mxu0 0
    %888 = vmatpush1.bf16.msra.mxu0 %v790
    %889 = vmatprep.subr.bf16.mxu0 0
    %890 = vmatpush1.bf16.msra.mxu0 %v791
    %891 = vmatprep.subr.bf16.mxu0 0
    %892 = vmatpush1.bf16.msra.mxu0 %v792
    %893 = vmatprep.subr.bf16.mxu0 0
    %894 = vmatpush1.bf16.msra.mxu0 %v793
    %895 = vmatprep.subr.bf16.mxu0 0
    %896 = vmatpush1.bf16.msra.mxu0 %v794
    %897 = vmatprep.subr.bf16.mxu0 0
    %898 = vmatpush1.bf16.msra.mxu0 %v795
    %899 = vmatprep.subr.bf16.mxu0 0
    %900 = vmatpush1.bf16.msra.mxu0 %v796
    %901 = vmatprep.mubr.bf16.mxu0 %v565
    %902 = vmatmul.mubr.bf16.gmra.mrb[0].mxu0 %v564
    %v903 = vpop.f32.mrb[0].mxu0
    %v904 = vadd.f32 %v864, %v903
    %v905 = vpop.f32.mrb[0].mxu0
    %v906 = vpop.f32.mrb[0].mxu0
    %v907 = vpop.f32.mrb[0].mxu0
    %908 = vdwg.mxu0
    %909 = vst [vmem:[#allocation8] sm:$0xff] %v904
    // Predicated region
    $region34: #{tpu_custom_call.1} parent=1 // pred_check
      _
    $region35: #{tpu_custom_call.1} parent=1 // pred_check_branch
      %911 = sbr.rel (0) target = $region37
    $region36: #{tpu_custom_call.1} parent=1 // pred_region
      %s913 = ssub.s32 128, 128
      %914 = vsyncadd [#allocation4], %s913
      %s916 = sshll.u32 [#allocation8], 4
      %s917 = int_to_ptr.vmem [resolvable:$true] %s916
      %919 = dma.vmem_to_hbm [thread:$0]  %s917, 128, %s5, [#allocation4]
    $region37: #{tpu_custom_call.1} parent=1 // pred_fallthru
      _
    // Predicated region
    $region38: #{tpu_custom_call.1} parent=1 // pred_check
      _
    $region39: #{tpu_custom_call.1} parent=1 // pred_check_branch
      %921 = sbr.rel (0) target = $region41
    $region40: #{tpu_custom_call.1} parent=1 // pred_region
      %922 = dma.done [#allocation4], 128
    $region41: #{tpu_custom_call.1} parent=1 // pred_fallthru
      _
    %923 = vsyncpa [#allocation3], 1
    %924 = vsyncpa [#allocation6], 1
    %925 = vsyncpa [#allocation4], 1

</llo_original>
